<compile_context>
chip_gen: v6e
topology: v6e:2x2x1
jax: 0.10.0
libtpu: 0.0.40
codegen_flags: <defaults>
</compile_context>

<pallas_src>
import functools

import numpy as np
import jax
import jax.numpy as jnp
from jax import lax
from jax.experimental import pallas as pl
from jax.experimental.pallas import tpu as pltpu


def _round_up(x, m):
    return (x + m - 1) // m * m


def _embedding_gather_kernel(ids_ref, table_hbm, out_ref, row_buf, sem, *,
                             tile, scale):
    """Gather `tile` table rows via DMA, scale by sqrt(D), write the tile.

    ids_ref:   (n_pad,)  int32 token ids in SMEM (scalar prefetch)
    table_hbm: (V, D)    embedding table, left in HBM (memory_space=pl.ANY)
    out_ref:   (tile, D) output VMEM block for this grid step
    row_buf:   (tile, D) VMEM landing buffer for the row DMAs
    sem:       shared DMA completion semaphore for all row copies of a tile
    """
    base = pl.program_id(0) * tile

    # Issue all row copies for this tile (they overlap in the DMA engine).
    def issue(r, carry):
        tok = ids_ref[base + r]
        pltpu.make_async_copy(table_hbm.at[pl.ds(tok, 1), :],
                              row_buf.at[pl.ds(r, 1), :],
                              sem).start()
        return carry

    lax.fori_loop(0, tile, issue, 0)

    # Drain: every copy has the same byte count, so waiting `tile` times on
    # the shared semaphore consumes exactly what was issued above.
    def drain(r, carry):
        tok = ids_ref[base + r]
        pltpu.make_async_copy(table_hbm.at[pl.ds(tok, 1), :],
                              row_buf.at[pl.ds(r, 1), :],
                              sem).wait()
        return carry

    lax.fori_loop(0, tile, drain, 0)

    # sqrt(input_dim) scale applied once on the f32 accumulator path (VPU).
    out_ref[...] = (row_buf[...] * scale).astype(out_ref.dtype)


@functools.partial(jax.jit, static_argnames=("input_dim", "token_tile"))
def embedding_forward(x, table, *, input_dim, token_tile=512):
    """x: (...) int ids; table: (vocab, input_dim). Returns (..., input_dim)."""
    V, D = table.shape
    out_dtype = table.dtype
    scale = float(np.sqrt(input_dim))

    orig_shape = x.shape
    flat = x.reshape(-1).astype(jnp.int32)
    n = flat.shape[0]

    # PyTorch raises on out-of-range ids; here an OOB id would become an
    # out-of-bounds HBM DMA, so clamp into range instead.
    flat = jnp.clip(flat, 0, V - 1)

    itemsize = jnp.dtype(out_dtype).itemsize
    # Large, sublane-aligned token tile, bounded by the actual token count
    # and by a ~24 MiB VMEM buffer budget (row_buf + double-buffered output
    # blocks) so the same code fits v5e/v6e/v7x scoped-VMEM limits.
    max_tile = max(8, ((24 << 20) // (3 * D * itemsize)) // 8 * 8)
    tile = min(int(token_tile), _round_up(max(n, 8), 8), max_tile)
    tile = _round_up(tile, 8)

    n_pad = _round_up(n, tile)
    if n_pad != n:
        # Pad with token id 0 (valid row); padded rows are sliced off below.
        flat = jnp.concatenate([flat, jnp.zeros((n_pad - n,), jnp.int32)])

    vmem_limit = int(min(48 << 20,
                         max(16 << 20, 3 * tile * D * itemsize + (4 << 20))))

    kernel = functools.partial(_embedding_gather_kernel, tile=tile, scale=scale)
    out = pl.pallas_call(
        kernel,
        out_shape=jax.ShapeDtypeStruct((n_pad, D), out_dtype),
        grid_spec=pltpu.PrefetchScalarGridSpec(
            num_scalar_prefetch=1,                       # flat ids -> SMEM
            grid=(n_pad // tile,),
            in_specs=[pl.BlockSpec(memory_space=pl.ANY)],  # table stays in HBM
            out_specs=pl.BlockSpec((tile, D), lambda i, ids: (i, 0)),
            scratch_shapes=[pltpu.VMEM((tile, D), out_dtype),
                            pltpu.SemaphoreType.DMA(())],
        ),
        compiler_params=pltpu.CompilerParams(
            dimension_semantics=("parallel",),
            vmem_limit_bytes=vmem_limit,
        ),
    )(flat, table)

    return out[:n].reshape(*orig_shape, D)


if __name__ == "__main__":
    input_dim = 128
    vocab_size = 64
    batch, seq = 2, 8

    key = jax.random.PRNGKey(0)
    k_w, k_x = jax.random.split(key)

    # nn.Embedding default init: weight ~ N(0, 1)
    table = jax.random.normal(k_w, (vocab_size, input_dim), dtype=jnp.float32)
    x = jax.random.randint(k_x, (batch, seq), 0, vocab_size, dtype=jnp.int32)

    out = jax.block_until_ready(embedding_forward(x, table, input_dim=input_dim))

    # Reference check (plain JAX gather + scale), same semantics as PyTorch.
    ref = table[x] * np.sqrt(input_dim)
    assert out.shape == (batch, seq, input_dim)
    np.testing.assert_allclose(np.asarray(out), np.asarray(ref),
                               rtol=1e-5, atol=1e-5)

    print("KERNEL_OK")
</pallas_src>

<mosaic_0001>
module attributes {stable_mosaic.version = 11 : i64} {
  func.func @_embedding_gather_kernel(%arg0: i32, %arg1: memref<16xi32, #tpu.memory_space<smem>>, %arg2: memref<64x128xf32, #tpu.memory_space<any>>, %arg3: memref<16x128xf32, #tpu.memory_space<vmem>>, %arg4: memref<16x128xf32, #tpu.memory_space<vmem>>, %arg5: memref<!tpu.dma_semaphore, #tpu.memory_space<semaphore_mem>>) attributes {dimension_semantics = [#tpu.dimension_semantics<parallel>], iteration_bounds = array<i64: 1>, scalar_prefetch = 1 : i64, scratch_operands = 2 : i64, tpu.core_type = #tpu.core_type<tc>, window_params = [{}, {transform_indices = @transform_1, window_bounds = array<i64: 16, 128>}]} {
    %c16_i32 = arith.constant 16 : i32
    %0 = arith.muli %arg0, %c16_i32 : i32
    %c0_i32 = arith.constant 0 : i32
    %c16_i32_0 = arith.constant 16 : i32
    %1 = arith.addi %c0_i32, %c16_i32_0 : i32
    %c1_i32 = arith.constant 1 : i32
    scf.for %arg6 = %c0_i32 to %1 step %c1_i32  : i32 {
      %7 = arith.addi %0, %arg6 : i32
      %8 = arith.index_cast %7 : i32 to index
      %9 = memref.load %arg1[%8] : memref<16xi32, #tpu.memory_space<smem>>
      %c0_i32_9 = arith.constant 0 : i32
      %10 = tpu.memref_slice %arg2[%9, %c0_i32_9] : memref<64x128xf32, #tpu.memory_space<any>> -> memref<1x128xf32, #tpu.memory_space<any>>
      %c0_i32_10 = arith.constant 0 : i32
      %11 = tpu.memref_slice %arg4[%arg6, %c0_i32_10] : memref<16x128xf32, #tpu.memory_space<vmem>> -> memref<1x128xf32, #tpu.memory_space<vmem>>
      tpu.enqueue_dma source(%10 : memref<1x128xf32, #tpu.memory_space<any>>) target(%11 : memref<1x128xf32, #tpu.memory_space<vmem>>) target_semaphore(%arg5 : memref<!tpu.dma_semaphore, #tpu.memory_space<semaphore_mem>>)
    }
    %c16_i32_1 = arith.constant 16 : i32
    %c0_i32_2 = arith.constant 0 : i32
    %c16_i32_3 = arith.constant 16 : i32
    %2 = arith.addi %c0_i32_2, %c16_i32_3 : i32
    %c1_i32_4 = arith.constant 1 : i32
    scf.for %arg6 = %c0_i32_2 to %2 step %c1_i32_4  : i32 {
      %7 = arith.addi %0, %arg6 : i32
      %8 = arith.index_cast %7 : i32 to index
      %9 = memref.load %arg1[%8] : memref<16xi32, #tpu.memory_space<smem>>
      %c0_i32_9 = arith.constant 0 : i32
      %10 = tpu.memref_slice %arg2[%9, %c0_i32_9] : memref<64x128xf32, #tpu.memory_space<any>> -> memref<1x128xf32, #tpu.memory_space<any>>
      %c0_i32_10 = arith.constant 0 : i32
      %11 = tpu.memref_slice %arg4[%arg6, %c0_i32_10] : memref<16x128xf32, #tpu.memory_space<vmem>> -> memref<1x128xf32, #tpu.memory_space<vmem>>
      tpu.wait_dma2 semaphore(%arg5 : memref<!tpu.dma_semaphore, #tpu.memory_space<semaphore_mem>>) src(%10 : memref<1x128xf32, #tpu.memory_space<any>>) dst(%11 : memref<1x128xf32, #tpu.memory_space<vmem>>)
    }
    %c16_i32_5 = arith.constant 16 : i32
    %c0 = arith.constant 0 : index
    %c0_6 = arith.constant 0 : index
    %3 = vector.load %arg4[%c0, %c0_6] : memref<16x128xf32, #tpu.memory_space<vmem>>, vector<16x128xf32>
    %cst = arith.constant 11.3137083 : f32
    %4 = vector.broadcast %cst : f32 to vector<16x128xf32>
    %5 = arith.mulf %3, %4 : vector<16x128xf32>
    %c0_7 = arith.constant 0 : index
    %c0_8 = arith.constant 0 : index
    %6 = vector.load %arg3[%c0_7, %c0_8] : memref<16x128xf32, #tpu.memory_space<vmem>>, vector<16x128xf32>
    tpu.vector_store %arg3[%c0_7, %c0_8], %5 {strides = array<i32>} : memref<16x128xf32, #tpu.memory_space<vmem>>, vector<16x128xf32>,
    return
  }
  func.func @transform_1(%arg0: i32, %arg1: memref<16xi32, #tpu.memory_space<smem>>) -> (i32, i32) {
    %c0_i32 = arith.constant 0 : i32
    %c0_i32_0 = arith.constant 0 : i32
    return %arg0, %c0_i32 : i32, i32
  }
}

</mosaic_0001>

<llo_original>
// kernel: embedding_forward.1
$region0: #{embedding_forward.1}
  #allocation0 [shape = 'u32[]', space=smem, size = 0x4, offset = 0x4, fixed_abs, tag = 'smem constant byte address 0x4 - core index']
  #allocation1 [shape = 'u32[144,128]{1,0:T(1,128)}', space=vmem, size = 0x12000, scoped, tag = 'internal scratch']
  #allocation2 [shape = 'f32[16,128]{1,0:T(8,128)}', space=vmem, size = 0x2000, scoped, tag = 'scratch operand']
  #allocation3 [shape = 's32[1]{0}', space=sflag, size = 0x4, scoped, tag = 'scratch operand']
  #allocation4 [shape = 's32[1]{0}', space=sflag, size = 0x4, scoped, tag = 'scoped memory for embedding_forward.1']
  #allocation5 [shape = 'u8[512]{0}', space=smem, size = 0x200, scoped, tag = 'prefetched SMEM operand 0']
  #allocation8 [shape = 's32[]', space=sflag, size = 0x4, offset = 0, fixed_abs, tag = 'sflag constant byte address 0x0 - dummy sync flag']
  #allocation9 [shape = 's32[]', space=sflag, size = 0x4, offset = 0, fixed_abs, tag = 'sflag constant byte address 0x0 - dummy sync flag']
  #allocation10 [shape = 'u32[]', space=smem, size = 0x4, offset = 0x44, fixed_abs, tag = 'smem constant byte address 0x44 - assertion arg 0']
  #allocation11 [shape = 'u32[]', space=smem, size = 0x4, offset = 0x48, fixed_abs, tag = 'smem constant byte address 0x48 - assertion arg 1']
  %s0 = inlined_call_operand.vmem [shape: s32[16], index: 0, kind: input, shape index: {}]
  %s1 = inlined_call_operand.hbm [shape: f32[64,128], index: 1, kind: input, shape index: {}]
  %s2 = inlined_call_operand.hbm [shape: f32[16,128], index: 2, kind: output, shape index: {}]
  %s3 = sld [smem:[#allocation0]]
  $region28: #{embedding_forward.1} parent=0
    _
  %s5 = ssub.s32 1, %s3
  %s6 = scalar_select 0, %s5, %s3
  %s7 = sshll.u32 %s0, 4
  %s8 = int_to_ptr.vmem [resolvable:$true] %s7
  %10 = dma.vmem_to_smem %s8, 16, [#allocation5], [#allocation4]
  %11 = dma.done [#allocation4], 16
  %12 = sfence
  $region1: #{embedding_forward.1} parent=0
    #allocation6 [shape = 'u8[8192]{0}', space=vmem, size = 0x2000, scoped, tag = 'output window, operand 0, single buffered']
    #allocation7 [shape = 's32[1]{0}', space=sflag, size = 0x4, scoped, tag = 'scoped memory for embedding_forward.1']
    %13 = vsyncpa [#allocation7], 0
    %s14 = smul.u32 0, 16
    loop: start=0, step=1, limit=16
    $region2: #{embedding_forward.1} parent=1 // loop_pre_header
      _
    $region3: #{embedding_forward.1} parent=1 // loop_header
      %s16 = sphi 0, %s20
      %p17 = scmp.ge.s32.totalorder %s16, 16
    $region4: #{embedding_forward.1} parent=1 // loop_header_branch
      %19 = sbr.rel (%p17) target = $region8
    $region5: #{embedding_forward.1} parent=1 // loop_body
      %s21 = sadd.s32 %s14, %s16
      %s22 = sld [smem:[#allocation5 + %s21]]
      %s23 = smul.addr %s22, 16
      %s24 = scalar_lea.hbm %s1, %s23
      %s25 = scalar_lea.vmem [#allocation2], %s16
      // Predicated region
      $region9: #{embedding_forward.1} parent=5 // pred_check
        _
      $region10: #{embedding_forward.1} parent=5 // pred_check_branch
        %27 = sbr.rel target = $region12
      $region11: #{embedding_forward.1} parent=5 // pred_region
        %28 = sst [smem:[#allocation10]] [#allocation9]
        %29 = sst [smem:[#allocation11]] [#allocation8]
      $region12: #{embedding_forward.1} parent=5 // pred_fallthru
        _
      %31 = shalt.err (0)
      %s33 = sshll.u32 %s25, 4
      %s34 = int_to_ptr.vmem [resolvable:$true] %s33
      %36 = dma.hbm_to_vmem [thread:$0]  %s24, 16, %s34, [#allocation3]
    $region6: #{embedding_forward.1} parent=1 // loop_footer
      %s20 = sadd.s32 1, %s16
    $region7: #{embedding_forward.1} parent=1 // loop_footer_branch
      %15 = sbr.rel target = $region3
    $region8: #{embedding_forward.1} parent=1 // loop_exit
      _
    loop: start=0, step=1, limit=16
    $region13: #{embedding_forward.1} parent=1 // loop_pre_header
      _
    $region14: #{embedding_forward.1} parent=1 // loop_header
      %s38 = sphi 0, %s42
      %p39 = scmp.ge.s32.totalorder %s38, 16
    $region15: #{embedding_forward.1} parent=1 // loop_header_branch
      %41 = sbr.rel (%p39) target = $region19
    $region16: #{embedding_forward.1} parent=1 // loop_body
      %s43 = sadd.s32 %s14, %s38
      %s44 = sld [smem:[#allocation5 + %s43]]
      %s45 = smul.u32 1, 1
      %s46 = sshll.u32 %s45, 4
      %47 = dma.done [#allocation3], %s46
    $region17: #{embedding_forward.1} parent=1 // loop_footer
      %s42 = sadd.s32 1, %s38
    $region18: #{embedding_forward.1} parent=1 // loop_footer_branch
      %37 = sbr.rel target = $region14
    $region19: #{embedding_forward.1} parent=1 // loop_exit
      _
    %v48 = vld [vmem:[#allocation2] sm:$0xff]
    %v49 = vld [vmem:[#allocation2 + $0x8] sm:$0xff]
    %v50 = vmul.f32 %v48, 11.313708
    %v51 = vmul.f32 %v49, 11.313708
    %52 = vst [vmem:[#allocation6] sm:$0xff] %v50
    %53 = vst [vmem:[#allocation6 + $0x8] sm:$0xff] %v51
    // Predicated region
    $region20: #{embedding_forward.1} parent=1 // pred_check
      _
    $region21: #{embedding_forward.1} parent=1 // pred_check_branch
      %55 = sbr.rel (0) target = $region23
    $region22: #{embedding_forward.1} parent=1 // pred_region
      %s57 = ssub.s32 256, 256
      %58 = vsyncadd [#allocation7], %s57
      %s59 = sshll.u32 [#allocation6], 4
      %s60 = int_to_ptr.vmem [resolvable:$true] %s59
      %65 = dma.vmem_to_hbm [thread:$0]  %s60, 256, %s2, [#allocation7], 128, 128, 8
    $region23: #{embedding_forward.1} parent=1 // pred_fallthru
      _
    // Predicated region
    $region24: #{embedding_forward.1} parent=1 // pred_check
      _
    $region25: #{embedding_forward.1} parent=1 // pred_check_branch
      %67 = sbr.rel (0) target = $region27
    $region26: #{embedding_forward.1} parent=1 // pred_region
      %68 = dma.done [#allocation7], 256
    $region27: #{embedding_forward.1} parent=1 // pred_fallthru
      _
    %69 = vsyncpa [#allocation7], 1
  %70 = vsyncmov [#allocation3]
  %s71 = vpop.sfrf %70
  %p72 = scmp.eq.s32.totalorder %s71, 0
  %p73 = pneg %p72
  %75 = shalt.err (%p73)

</llo_original>
